<compile_context>
chip_gen: v6e
topology: v6e:2x2x1
jax: 0.10.0
libtpu: 0.0.40
codegen_flags: <defaults>
</compile_context>

<pallas_src>
import functools

import jax
import jax.numpy as jnp
from jax.experimental import pallas as pl
from jax.experimental.pallas import tpu as pltpu


HIDDEN = 64
OUT_ROWS = 8  # sublane-aligned padded output rows (real logits = first 2 rows)


def _round_up(n, m):
    return ((n + m - 1) // m) * m


def two_moons_kernel(x_ref, w1_ref, b1_ref, w2_ref, b2_ref, w3_ref, b3_ref, o_ref):
    # Feature-major: x_ref (2, TB); weights stored (out_features, in_features);
    # biases as (out_features, 1) columns; o_ref (8, TB).
    x = x_ref[...]                                           # (2, TB)

    # fc1 + relu: (64, 2) @ (2, TB) -> (64, TB).  K=2 is a single cheap MXU
    # pass; N = TB streams through the systolic array.
    h = jnp.dot(w1_ref[...], x.astype(w1_ref.dtype),
                preferred_element_type=jnp.float32)
    h = jnp.maximum(h + b1_ref[...], 0.0)
    # dropout1: identity in eval mode.

    # fc2 + relu: (64, 64) @ (64, TB), f32 accumulation.
    h = jnp.dot(w2_ref[...], h.astype(w2_ref.dtype),
                preferred_element_type=jnp.float32)
    h = jnp.maximum(h + b2_ref[...], 0.0)
    # dropout2: identity in eval mode.

    # fc3 (logits): (8, 64) @ (64, TB).  Rows 2..7 of w3/b3 are zero padding so
    # the store is a full (8, TB) lane-dense block; the wrapper keeps rows 0..1.
    out = jnp.dot(w3_ref[...], h.astype(w3_ref.dtype),
                  preferred_element_type=jnp.float32) + b3_ref[...]
    o_ref[...] = out.astype(o_ref.dtype)


@functools.partial(jax.jit, static_argnames=("tile_max", "compute_dtype"))
def two_moons_forward(x, params, *, tile_max=16384, compute_dtype=jnp.float32):
    """x: [B, 2] float32.  params: w1 (2,64), b1 (1,64), w2 (64,64), b2 (1,64),
    w3 (64,2), b3 (1,2) — weights stored (in_features, out_features)."""
    B = x.shape[0]
    n_out = params["w3"].shape[1]  # 2

    # Balance the tile over the grid (minimizes batch padding) and keep it
    # lane-aligned (multiple of 128).
    n_steps = max(1, -(-B // tile_max))
    tile_b = _round_up(-(-B // n_steps), 128)
    b_pad = tile_b * n_steps

    # Feature-major, zero-padded input: one fat lane-dense DMA per tile.
    x_t = jnp.zeros((2, b_pad), jnp.float32).at[:, :B].set(x.T)

    # Weights transposed to (out, in); biases as columns (out, 1).
    w1_t = params["w1"].T                                   # (64, 2)
    w2_t = params["w2"].T                                   # (64, 64)
    b1_c = params["b1"].reshape(HIDDEN, 1)
    b2_c = params["b2"].reshape(HIDDEN, 1)
    # fc3 padded to 8 sublane-aligned output rows (rows >= n_out are zeros).
    w3_t = jnp.zeros((OUT_ROWS, HIDDEN), jnp.float32).at[:n_out, :].set(params["w3"].T)
    b3_c = jnp.zeros((OUT_ROWS, 1), jnp.float32).at[:n_out, :].set(
        params["b3"].reshape(n_out, 1))

    # Optional low-precision MXU path (bf16 on v6e/v7x); accumulation is f32,
    # biases / relu epilogue stay f32.
    x_t = x_t.astype(compute_dtype)
    w1_c = w1_t.astype(compute_dtype)
    w2_c = w2_t.astype(compute_dtype)
    w3_c = w3_t.astype(compute_dtype)

    grid = (n_steps,)
    const = lambda i: (0, 0)

    out_t = pl.pallas_call(
        two_moons_kernel,
        out_shape=jax.ShapeDtypeStruct((OUT_ROWS, b_pad), jnp.float32),
        grid=grid,
        in_specs=[
            pl.BlockSpec((2, tile_b), lambda i: (0, i)),      # x tile (streamed)
            pl.BlockSpec((HIDDEN, 2), const),                 # w1^T (resident)
            pl.BlockSpec((HIDDEN, 1), const),                 # b1
            pl.BlockSpec((HIDDEN, HIDDEN), const),            # w2^T
            pl.BlockSpec((HIDDEN, 1), const),                 # b2
            pl.BlockSpec((OUT_ROWS, HIDDEN), const),          # w3^T (row-padded)
            pl.BlockSpec((OUT_ROWS, 1), const),               # b3 (row-padded)
        ],
        out_specs=pl.BlockSpec((OUT_ROWS, tile_b), lambda i: (0, i)),
        compiler_params=pltpu.CompilerParams(
            dimension_semantics=("parallel",),
            vmem_limit_bytes=32 * 1024 * 1024,
        ),
    )(x_t, w1_c, b1_c, w2_c, b2_c, w3_c, b3_c)

    # Keep the 2 real logit rows and the real batch; transpose back to (B, 2).
    return out_t[:n_out, :B].T


def init_params(key):
    """Deterministic init matching nn.Linear shapes; weights stored (in, out)."""
    ks = jax.random.split(key, 6)

    def uinit(k, shape, fan_in):
        bound = 1.0 / jnp.sqrt(fan_in)
        return jax.random.uniform(k, shape, jnp.float32, -bound, bound)

    return {
        "w1": uinit(ks[0], (2, HIDDEN), 2.0),
        "b1": uinit(ks[1], (1, HIDDEN), 2.0),
        "w2": uinit(ks[2], (HIDDEN, HIDDEN), 64.0),
        "b2": uinit(ks[3], (1, HIDDEN), 64.0),
        "w3": uinit(ks[4], (HIDDEN, 2), 64.0),
        "b3": uinit(ks[5], (1, 2), 64.0),
    }


def reference_forward(x, params):
    h = jnp.maximum(x @ params["w1"] + params["b1"], 0.0)
    h = jnp.maximum(h @ params["w2"] + params["b2"], 0.0)
    return h @ params["w3"] + params["b3"]


if __name__ == "__main__":
    key = jax.random.PRNGKey(0)
    pkey, xkey = jax.random.split(key)
    params = init_params(pkey)

    B = 8  # small batch of 2-D two-moons points
    x = jax.random.normal(xkey, (B, 2), jnp.float32)

    out = two_moons_forward(x, params)
    out = jax.block_until_ready(out)

    ref = reference_forward(x, params)
    assert out.shape == (B, 2)
    assert jnp.allclose(out, ref, atol=1e-4, rtol=1e-4), float(
        jnp.max(jnp.abs(out - ref)))

    print("KERNEL_OK")
</pallas_src>

<mosaic_0001>
module attributes {stable_mosaic.version = 11 : i64} {
  func.func @two_moons_kernel(%arg0: i32, %arg1: memref<2x128xf32, #tpu.memory_space<vmem>>, %arg2: memref<64x2xf32, #tpu.memory_space<vmem>>, %arg3: memref<64x1xf32, #tpu.memory_space<vmem>>, %arg4: memref<64x64xf32, #tpu.memory_space<vmem>>, %arg5: memref<64x1xf32, #tpu.memory_space<vmem>>, %arg6: memref<8x64xf32, #tpu.memory_space<vmem>>, %arg7: memref<8x1xf32, #tpu.memory_space<vmem>>, %arg8: memref<8x128xf32, #tpu.memory_space<vmem>>) attributes {dimension_semantics = [#tpu.dimension_semantics<parallel>], iteration_bounds = array<i64: 1>, scalar_prefetch = 0 : i64, scratch_operands = 0 : i64, tpu.core_type = #tpu.core_type<tc>, window_params = [{transform_indices = @transform_0, window_bounds = array<i64: 2, 128>}, {pipeline_mode = #tpu.pipeline_mode<synchronous>, transform_indices = @transform_1, window_bounds = array<i64: 64, 2>}, {pipeline_mode = #tpu.pipeline_mode<synchronous>, transform_indices = @transform_2, window_bounds = array<i64: 64, 1>}, {pipeline_mode = #tpu.pipeline_mode<synchronous>, transform_indices = @transform_3, window_bounds = array<i64: 64, 64>}, {pipeline_mode = #tpu.pipeline_mode<synchronous>, transform_indices = @transform_4, window_bounds = array<i64: 64, 1>}, {pipeline_mode = #tpu.pipeline_mode<synchronous>, transform_indices = @transform_5, window_bounds = array<i64: 8, 64>}, {pipeline_mode = #tpu.pipeline_mode<synchronous>, transform_indices = @transform_6, window_bounds = array<i64: 8, 1>}, {transform_indices = @transform_7, window_bounds = array<i64: 8, 128>}]} {
    %c0 = arith.constant 0 : index
    %c0_0 = arith.constant 0 : index
    %0 = vector.load %arg1[%c0, %c0_0] : memref<2x128xf32, #tpu.memory_space<vmem>>, vector<2x128xf32>
    %c0_1 = arith.constant 0 : index
    %c0_2 = arith.constant 0 : index
    %1 = vector.load %arg2[%c0_1, %c0_2] : memref<64x2xf32, #tpu.memory_space<vmem>>, vector<64x2xf32>
    %cst = arith.constant dense<0.000000e+00> : vector<64x128xf32>
    %2 = tpu.matmul %1, %0, %cst {dimension_numbers = #tpu.dot_dimension_numbers<[1], [0], [0], [1], [0, 0, 1, 1], [], []>} : vector<64x2xf32>, vector<2x128xf32>, vector<64x128xf32> -> vector<64x128xf32>
    %c0_3 = arith.constant 0 : index
    %c0_4 = arith.constant 0 : index
    %3 = vector.load %arg3[%c0_3, %c0_4] : memref<64x1xf32, #tpu.memory_space<vmem>>, vector<64x1xf32>
    %4 = vector.broadcast %3 : vector<64x1xf32> to vector<64x128xf32>
    %5 = arith.addf %2, %4 : vector<64x128xf32>
    %cst_5 = arith.constant 0.000000e+00 : f32
    %6 = vector.broadcast %cst_5 : f32 to vector<64x128xf32>
    %7 = arith.maximumf %5, %6 : vector<64x128xf32>
    %c0_6 = arith.constant 0 : index
    %c0_7 = arith.constant 0 : index
    %8 = vector.load %arg4[%c0_6, %c0_7] : memref<64x64xf32, #tpu.memory_space<vmem>>, vector<64x64xf32>
    %cst_8 = arith.constant dense<0.000000e+00> : vector<64x128xf32>
    %9 = tpu.matmul %8, %7, %cst_8 {dimension_numbers = #tpu.dot_dimension_numbers<[1], [0], [0], [1], [0, 0, 1, 1], [], []>} : vector<64x64xf32>, vector<64x128xf32>, vector<64x128xf32> -> vector<64x128xf32>
    %c0_9 = arith.constant 0 : index
    %c0_10 = arith.constant 0 : index
    %10 = vector.load %arg5[%c0_9, %c0_10] : memref<64x1xf32, #tpu.memory_space<vmem>>, vector<64x1xf32>
    %11 = vector.broadcast %10 : vector<64x1xf32> to vector<64x128xf32>
    %12 = arith.addf %9, %11 : vector<64x128xf32>
    %cst_11 = arith.constant 0.000000e+00 : f32
    %13 = vector.broadcast %cst_11 : f32 to vector<64x128xf32>
    %14 = arith.maximumf %12, %13 : vector<64x128xf32>
    %c0_12 = arith.constant 0 : index
    %c0_13 = arith.constant 0 : index
    %15 = vector.load %arg6[%c0_12, %c0_13] : memref<8x64xf32, #tpu.memory_space<vmem>>, vector<8x64xf32>
    %cst_14 = arith.constant dense<0.000000e+00> : vector<8x128xf32>
    %16 = tpu.matmul %15, %14, %cst_14 {dimension_numbers = #tpu.dot_dimension_numbers<[1], [0], [0], [1], [0, 0, 1, 1], [], []>} : vector<8x64xf32>, vector<64x128xf32>, vector<8x128xf32> -> vector<8x128xf32>
    %c0_15 = arith.constant 0 : index
    %c0_16 = arith.constant 0 : index
    %17 = vector.load %arg7[%c0_15, %c0_16] : memref<8x1xf32, #tpu.memory_space<vmem>>, vector<8x1xf32>
    %18 = vector.broadcast %17 : vector<8x1xf32> to vector<8x128xf32>
    %19 = arith.addf %16, %18 : vector<8x128xf32>
    %c0_17 = arith.constant 0 : index
    %c0_18 = arith.constant 0 : index
    %20 = vector.load %arg8[%c0_17, %c0_18] : memref<8x128xf32, #tpu.memory_space<vmem>>, vector<8x128xf32>
    tpu.vector_store %arg8[%c0_17, %c0_18], %19 {strides = array<i32>} : memref<8x128xf32, #tpu.memory_space<vmem>>, vector<8x128xf32>,
    return
  }
  func.func @transform_0(%arg0: i32) -> (i32, i32) {
    %c0_i32 = arith.constant 0 : i32
    %c0_i32_0 = arith.constant 0 : i32
    return %c0_i32, %arg0 : i32, i32
  }
  func.func @transform_1(%arg0: i32) -> (i32, i32) {
    %c0_i32 = arith.constant 0 : i32
    %c0_i32_0 = arith.constant 0 : i32
    %c0_i32_1 = arith.constant 0 : i32
    return %c0_i32, %c0_i32_0 : i32, i32
  }
  func.func @transform_2(%arg0: i32) -> (i32, i32) {
    %c0_i32 = arith.constant 0 : i32
    %c0_i32_0 = arith.constant 0 : i32
    %c0_i32_1 = arith.constant 0 : i32
    return %c0_i32, %c0_i32_0 : i32, i32
  }
  func.func @transform_3(%arg0: i32) -> (i32, i32) {
    %c0_i32 = arith.constant 0 : i32
    %c0_i32_0 = arith.constant 0 : i32
    %c0_i32_1 = arith.constant 0 : i32
    return %c0_i32, %c0_i32_0 : i32, i32
  }
  func.func @transform_4(%arg0: i32) -> (i32, i32) {
    %c0_i32 = arith.constant 0 : i32
    %c0_i32_0 = arith.constant 0 : i32
    %c0_i32_1 = arith.constant 0 : i32
    return %c0_i32, %c0_i32_0 : i32, i32
  }
  func.func @transform_5(%arg0: i32) -> (i32, i32) {
    %c0_i32 = arith.constant 0 : i32
    %c0_i32_0 = arith.constant 0 : i32
    %c0_i32_1 = arith.constant 0 : i32
    return %c0_i32, %c0_i32_0 : i32, i32
  }
  func.func @transform_6(%arg0: i32) -> (i32, i32) {
    %c0_i32 = arith.constant 0 : i32
    %c0_i32_0 = arith.constant 0 : i32
    %c0_i32_1 = arith.constant 0 : i32
    return %c0_i32, %c0_i32_0 : i32, i32
  }
  func.func @transform_7(%arg0: i32) -> (i32, i32) {
    %c0_i32 = arith.constant 0 : i32
    %c0_i32_0 = arith.constant 0 : i32
    return %c0_i32, %arg0 : i32, i32
  }
}

</mosaic_0001>

<llo_original>
// kernel: two_moons_forward.1
$region0: #{two_moons_forward.1}
  #allocation0 [shape = 'u32[]', space=smem, size = 0x4, offset = 0x4, fixed_abs, tag = 'smem constant byte address 0x4 - core index']
  #allocation1 [shape = 'u32[144,128]{1,0:T(1,128)}', space=vmem, size = 0x12000, scoped, tag = 'internal scratch']
  %s0 = inlined_call_operand.vmem [shape: f32[2,128], index: 0, kind: input, shape index: {}]
  %s1 = inlined_call_operand.vmem [shape: f32[64,2], index: 1, kind: input, shape index: {}]
  %s2 = inlined_call_operand.vmem [shape: f32[64,1], index: 2, kind: input, shape index: {}]
  %s3 = inlined_call_operand.vmem [shape: f32[64,64], index: 3, kind: input, shape index: {}]
  %s4 = inlined_call_operand.vmem [shape: f32[64,1], index: 4, kind: input, shape index: {}]
  %s5 = inlined_call_operand.vmem [shape: f32[8,64], index: 5, kind: input, shape index: {}]
  %s6 = inlined_call_operand.vmem [shape: f32[8,1], index: 6, kind: input, shape index: {}]
  %s7 = inlined_call_operand.vmem [shape: f32[8,128], index: 7, kind: output, shape index: {}]
  %s8 = sld [smem:[#allocation0]]
  $region38: #{two_moons_forward.1} parent=0
    _
  %s10 = ssub.s32 1, %s8
  %s11 = scalar_select 0, %s10, %s8
  // Predicated region
  $region2: #{two_moons_forward.1} parent=0 // pred_check
    _
  $region3: #{two_moons_forward.1} parent=0 // pred_check_branch
    %13 = sbr.rel (0) target = $region5
  $region4: #{two_moons_forward.1} parent=0 // pred_region
    _
  $region5: #{two_moons_forward.1} parent=0 // pred_fallthru
    _
  // Predicated region
  $region6: #{two_moons_forward.1} parent=0 // pred_check
    _
  $region7: #{two_moons_forward.1} parent=0 // pred_check_branch
    %15 = sbr.rel (0) target = $region9
  $region8: #{two_moons_forward.1} parent=0 // pred_region
    _
  $region9: #{two_moons_forward.1} parent=0 // pred_fallthru
    _
  // Predicated region
  $region10: #{two_moons_forward.1} parent=0 // pred_check
    _
  $region11: #{two_moons_forward.1} parent=0 // pred_check_branch
    %17 = sbr.rel (0) target = $region13
  $region12: #{two_moons_forward.1} parent=0 // pred_region
    _
  $region13: #{two_moons_forward.1} parent=0 // pred_fallthru
    _
  // Predicated region
  $region14: #{two_moons_forward.1} parent=0 // pred_check
    _
  $region15: #{two_moons_forward.1} parent=0 // pred_check_branch
    %19 = sbr.rel (0) target = $region17
  $region16: #{two_moons_forward.1} parent=0 // pred_region
    _
  $region17: #{two_moons_forward.1} parent=0 // pred_fallthru
    _
  // Predicated region
  $region18: #{two_moons_forward.1} parent=0 // pred_check
    _
  $region19: #{two_moons_forward.1} parent=0 // pred_check_branch
    %21 = sbr.rel (0) target = $region21
  $region20: #{two_moons_forward.1} parent=0 // pred_region
    _
  $region21: #{two_moons_forward.1} parent=0 // pred_fallthru
    _
  // Predicated region
  $region22: #{two_moons_forward.1} parent=0 // pred_check
    _
  $region23: #{two_moons_forward.1} parent=0 // pred_check_branch
    %23 = sbr.rel (0) target = $region25
  $region24: #{two_moons_forward.1} parent=0 // pred_region
    _
  $region25: #{two_moons_forward.1} parent=0 // pred_fallthru
    _
  // Predicated region
  $region26: #{two_moons_forward.1} parent=0 // pred_check
    _
  $region27: #{two_moons_forward.1} parent=0 // pred_check_branch
    %25 = sbr.rel (0) target = $region29
  $region28: #{two_moons_forward.1} parent=0 // pred_region
    _
  $region29: #{two_moons_forward.1} parent=0 // pred_fallthru
    _
  %v26 = vld [vmem:[%s0] sm:$0x3]
  %v27 = vld [vmem:[%s1] sm:$0xff]
  %v28 = vld [vmem:[%s1 + $0x8] sm:$0xff]
  %v29 = vld [vmem:[%s1 + $0x10] sm:$0xff]
  %v30 = vld [vmem:[%s1 + $0x18] sm:$0xff]
  %v31 = vld [vmem:[%s1 + $0x20] sm:$0xff]
  %v32 = vld [vmem:[%s1 + $0x28] sm:$0xff]
  %v33 = vld [vmem:[%s1 + $0x30] sm:$0xff]
  %v34 = vld [vmem:[%s1 + $0x38] sm:$0xff]
  %v35 = vld [vmem:[%s2] sm:$0xff]
  %v36 = vld [vmem:[%s2 + $0x8] sm:$0xff]
  %v37 = vld [vmem:[%s2 + $0x10] sm:$0xff]
  %v38 = vld [vmem:[%s2 + $0x18] sm:$0xff]
  %v39 = vld [vmem:[%s2 + $0x20] sm:$0xff]
  %v40 = vld [vmem:[%s2 + $0x28] sm:$0xff]
  %v41 = vld [vmem:[%s2 + $0x30] sm:$0xff]
  %v42 = vld [vmem:[%s2 + $0x38] sm:$0xff]
  %44 = vset.pattern.permute.xlu0 0
  %45 = vperm.xlu0 %44, %v35
  %v46 = vpop.permute.xlu0 %45
  %49 = vset.pattern.permute.xlu0 0
  %50 = vperm.xlu0 %49, %v36
  %v51 = vpop.permute.xlu0 %50
  %54 = vset.pattern.permute.xlu0 0
  %55 = vperm.xlu0 %54, %v37
  %v56 = vpop.permute.xlu0 %55
  %59 = vset.pattern.permute.xlu0 0
  %60 = vperm.xlu0 %59, %v38
  %v61 = vpop.permute.xlu0 %60
  %64 = vset.pattern.permute.xlu0 0
  %65 = vperm.xlu0 %64, %v39
  %v66 = vpop.permute.xlu0 %65
  %69 = vset.pattern.permute.xlu0 0
  %70 = vperm.xlu0 %69, %v40
  %v71 = vpop.permute.xlu0 %70
  %74 = vset.pattern.permute.xlu0 0
  %75 = vperm.xlu0 %74, %v41
  %v76 = vpop.permute.xlu0 %75
  %79 = vset.pattern.permute.xlu0 0
  %80 = vperm.xlu0 %79, %v42
  %v81 = vpop.permute.xlu0 %80
  %vm83 = vcmask 15360
  %v85 = vsel %vm83, %v27, 0
  %v88 = vsel %vm83, %v28, 0
  %v91 = vsel %vm83, %v29, 0
  %v94 = vsel %vm83, %v30, 0
  %v97 = vsel %vm83, %v31, 0
  %v100 = vsel %vm83, %v32, 0
  %v103 = vsel %vm83, %v33, 0
  %v106 = vsel %vm83, %v34, 0
  %vm108 = vcmask 1041408
  %v110 = vsel %vm108, %v26, 0
  %112 = vmatprep.subr.mxu0 0.0
  %113 = vmatpush1.msra.mxu0 0.0
  %114 = vmatprep.subr.mxu0 0.0
  %115 = vmatpush1.msra.mxu0 0.0
  %116 = vmatprep.subr.mxu0 0.0
  %117 = vmatpush1.msra.mxu0 0.0
  %118 = vmatprep.subr.mxu0 0.0
  %119 = vmatpush1.msra.mxu0 0.0
  %120 = vmatprep.subr.mxu0 0.0
  %121 = vmatpush1.msra.mxu0 0.0
  %122 = vmatprep.subr.mxu0 0.0
  %123 = vmatpush1.msra.mxu0 0.0
  %124 = vmatprep.subr.mxu0 0.0
  %125 = vmatpush1.msra.mxu0 0.0
  %126 = vmatprep.subr.mxu0 0.0
  %127 = vmatpush1.msra.mxu0 0.0
  %128 = vmatprep.subr.mxu0 0.0
  %129 = vmatpush1.msra.mxu0 0.0
  %130 = vmatprep.subr.mxu0 0.0
  %131 = vmatpush1.msra.mxu0 0.0
  %132 = vmatprep.subr.mxu0 0.0
  %133 = vmatpush1.msra.mxu0 0.0
  %134 = vmatprep.subr.mxu0 0.0
  %135 = vmatpush1.msra.mxu0 0.0
  %136 = vmatprep.subr.mxu0 0.0
  %137 = vmatpush1.msra.mxu0 0.0
  %138 = vmatprep.subr.mxu0 0.0
  %139 = vmatpush1.msra.mxu0 0.0
  %140 = vmatprep.subr.mxu0 0.0
  %141 = vmatpush1.msra.mxu0 0.0
  %142 = vmatprep.subr.mxu0 0.0
  %143 = vmatpush1.msra.mxu0 %v110
  %144 = vmatprep.subr.mxu0 0.0
  %145 = vmatpush2.msra.mxu0 0.0
  %146 = vmatprep.subr.mxu0 0.0
  %147 = vmatpush2.msra.mxu0 0.0
  %148 = vmatprep.subr.mxu0 0.0
  %149 = vmatpush2.msra.mxu0 0.0
  %150 = vmatprep.subr.mxu0 0.0
  %151 = vmatpush2.msra.mxu0 0.0
  %152 = vmatprep.subr.mxu0 0.0
  %153 = vmatpush2.msra.mxu0 0.0
  %154 = vmatprep.subr.mxu0 0.0
  %155 = vmatpush2.msra.mxu0 0.0
  %156 = vmatprep.subr.mxu0 0.0
  %157 = vmatpush2.msra.mxu0 0.0
  %158 = vmatprep.subr.mxu0 0.0
  %159 = vmatpush2.msra.mxu0 0.0
  %160 = vmatprep.subr.mxu0 0.0
  %161 = vmatpush2.msra.mxu0 0.0
  %162 = vmatprep.subr.mxu0 0.0
  %163 = vmatpush2.msra.mxu0 0.0
  %164 = vmatprep.subr.mxu0 0.0
  %165 = vmatpush2.msra.mxu0 0.0
  %166 = vmatprep.subr.mxu0 0.0
  %167 = vmatpush2.msra.mxu0 0.0
  %168 = vmatprep.subr.mxu0 0.0
  %169 = vmatpush2.msra.mxu0 0.0
  %170 = vmatprep.subr.mxu0 0.0
  %171 = vmatpush2.msra.mxu0 0.0
  %172 = vmatprep.subr.mxu0 0.0
  %173 = vmatpush2.msra.mxu0 0.0
  %174 = vmatprep.subr.mxu0 0.0
  %175 = vmatpush2.msra.mxu0 0.0
  %176 = vmatprep.mubr.f32.mxu0 0.0
  %177 = vmatmul.mubr.f32.gmra.mxu0 %v85
  %v178 = vpop.f32.mrf.mxu0
  %v179 = vadd.f32 %v46, %v178
  %v180 = vpop.f32.mrf.mxu0
  %181 = vmatprep.mubr.f32.mxu0 0.0
  %182 = vmatmul.mubr.f32.gmra.mxu0 %v88
  %v183 = vpop.f32.mrf.mxu0
  %v184 = vadd.f32 %v51, %v183
  %v185 = vpop.f32.mrf.mxu0
  %186 = vmatprep.mubr.f32.mxu0 0.0
  %187 = vmatmul.mubr.f32.gmra.mxu0 %v91
  %v188 = vpop.f32.mrf.mxu0
  %v189 = vadd.f32 %v56, %v188
  %v190 = vpop.f32.mrf.mxu0
  %191 = vmatprep.mubr.f32.mxu0 0.0
  %192 = vmatmul.mubr.f32.gmra.mxu0 %v94
  %v193 = vpop.f32.mrf.mxu0
  %v194 = vadd.f32 %v61, %v193
  %v195 = vpop.f32.mrf.mxu0
  %196 = vmatprep.mubr.f32.mxu0 0.0
  %197 = vmatmul.mubr.f32.gmra.mxu0 %v97
  %v198 = vpop.f32.mrf.mxu0
  %v199 = vadd.f32 %v66, %v198
  %v200 = vpop.f32.mrf.mxu0
  %201 = vmatprep.mubr.f32.mxu0 0.0
  %202 = vmatmul.mubr.f32.gmra.mxu0 %v100
  %v203 = vpop.f32.mrf.mxu0
  %v204 = vadd.f32 %v71, %v203
  %v205 = vpop.f32.mrf.mxu0
  %206 = vmatprep.mubr.f32.mxu0 0.0
  %207 = vmatmul.mubr.f32.gmra.mxu0 %v103
  %v208 = vpop.f32.mrf.mxu0
  %v209 = vadd.f32 %v76, %v208
  %v210 = vpop.f32.mrf.mxu0
  %211 = vmatprep.mubr.f32.mxu0 0.0
  %212 = vmatmul.mubr.f32.gmra.mxu0 %v106
  %v213 = vpop.f32.mrf.mxu0
  %v214 = vadd.f32 %v81, %v213
  %v215 = vpop.f32.mrf.mxu0
  %216 = vdwg.mxu0
  %v217 = vmax.f32 %v179, 0.0
  %v218 = vmax.f32 %v184, 0.0
  %v219 = vmax.f32 %v189, 0.0
  %v220 = vmax.f32 %v194, 0.0
  %v221 = vmax.f32 %v199, 0.0
  %v222 = vmax.f32 %v204, 0.0
  %v223 = vmax.f32 %v209, 0.0
  %v224 = vmax.f32 %v214, 0.0
  %v225 = vld [vmem:[%s3] sm:$0xff]
  %v226 = vld [vmem:[%s3 + $0x8] sm:$0xff]
  %v227 = vld [vmem:[%s3 + $0x10] sm:$0xff]
  %v228 = vld [vmem:[%s3 + $0x18] sm:$0xff]
  %v229 = vld [vmem:[%s3 + $0x20] sm:$0xff]
  %v230 = vld [vmem:[%s3 + $0x28] sm:$0xff]
  %v231 = vld [vmem:[%s3 + $0x30] sm:$0xff]
  %v232 = vld [vmem:[%s3 + $0x38] sm:$0xff]
  %v233 = vld [vmem:[%s4] sm:$0xff]
  %v234 = vld [vmem:[%s4 + $0x8] sm:$0xff]
  %v235 = vld [vmem:[%s4 + $0x10] sm:$0xff]
  %v236 = vld [vmem:[%s4 + $0x18] sm:$0xff]
  %v237 = vld [vmem:[%s4 + $0x20] sm:$0xff]
  %v238 = vld [vmem:[%s4 + $0x28] sm:$0xff]
  %v239 = vld [vmem:[%s4 + $0x30] sm:$0xff]
  %v240 = vld [vmem:[%s4 + $0x38] sm:$0xff]
  %242 = vset.pattern.permute.xlu0 0
  %243 = vperm.xlu0 %242, %v233
  %v244 = vpop.permute.xlu0 %243
  %247 = vset.pattern.permute.xlu0 0
  %248 = vperm.xlu0 %247, %v234
  %v249 = vpop.permute.xlu0 %248
  %252 = vset.pattern.permute.xlu0 0
  %253 = vperm.xlu0 %252, %v235
  %v254 = vpop.permute.xlu0 %253
  %257 = vset.pattern.permute.xlu0 0
  %258 = vperm.xlu0 %257, %v236
  %v259 = vpop.permute.xlu0 %258
  %262 = vset.pattern.permute.xlu0 0
  %263 = vperm.xlu0 %262, %v237
  %v264 = vpop.permute.xlu0 %263
  %267 = vset.pattern.permute.xlu0 0
  %268 = vperm.xlu0 %267, %v238
  %v269 = vpop.permute.xlu0 %268
  %272 = vset.pattern.permute.xlu0 0
  %273 = vperm.xlu0 %272, %v239
  %v274 = vpop.permute.xlu0 %273
  %277 = vset.pattern.permute.xlu0 0
  %278 = vperm.xlu0 %277, %v240
  %v279 = vpop.permute.xlu0 %278
  %vm281 = vcmask 523264
  %v283 = vsel %vm281, %v225, 0
  %v286 = vsel %vm281, %v226, 0
  %v289 = vsel %vm281, %v227, 0
  %v292 = vsel %vm281, %v228, 0
  %v295 = vsel %vm281, %v229, 0
  %v298 = vsel %vm281, %v230, 0
  %v301 = vsel %vm281, %v231, 0
  %v304 = vsel %vm281, %v232, 0
  %306 = vmatprep.subr.mxu0 0.0
  %307 = vmatpush1.msra.mxu0 0.0
  %308 = vmatprep.subr.mxu0 0.0
  %309 = vmatpush1.msra.mxu0 0.0
  %310 = vmatprep.subr.mxu0 0.0
  %311 = vmatpush1.msra.mxu0 0.0
  %312 = vmatprep.subr.mxu0 0.0
  %313 = vmatpush1.msra.mxu0 0.0
  %314 = vmatprep.subr.mxu0 0.0
  %315 = vmatpush1.msra.mxu0 0.0
  %316 = vmatprep.subr.mxu0 0.0
  %317 = vmatpush1.msra.mxu0 0.0
  %318 = vmatprep.subr.mxu0 0.0
  %319 = vmatpush1.msra.mxu0 0.0
  %320 = vmatprep.subr.mxu0 0.0
  %321 = vmatpush1.msra.mxu0 0.0
  %322 = vmatprep.subr.mxu0 0.0
  %323 = vmatpush1.msra.mxu0 %v224
  %324 = vmatprep.subr.mxu0 0.0
  %325 = vmatpush1.msra.mxu0 %v223
  %326 = vmatprep.subr.mxu0 0.0
  %327 = vmatpush1.msra.mxu0 %v222
  %328 = vmatprep.subr.mxu0 0.0
  %329 = vmatpush1.msra.mxu0 %v221
  %330 = vmatprep.subr.mxu0 0.0
  %331 = vmatpush1.msra.mxu0 %v220
  %332 = vmatprep.subr.mxu0 0.0
  %333 = vmatpush1.msra.mxu0 %v219
  %334 = vmatprep.subr.mxu0 0.0
  %335 = vmatpush1.msra.mxu0 %v218
  %336 = vmatprep.subr.mxu0 0.0
  %337 = vmatpush1.msra.mxu0 %v217
  %338 = vmatprep.subr.mxu0 0.0
  %339 = vmatpush2.msra.mxu0 0.0
  %340 = vmatprep.subr.mxu0 0.0
  %341 = vmatpush2.msra.mxu0 0.0
  %342 = vmatprep.subr.mxu0 0.0
  %343 = vmatpush2.msra.mxu0 0.0
  %344 = vmatprep.subr.mxu0 0.0
  %345 = vmatpush2.msra.mxu0 0.0
  %346 = vmatprep.subr.mxu0 0.0
  %347 = vmatpush2.msra.mxu0 0.0
  %348 = vmatprep.subr.mxu0 0.0
  %349 = vmatpush2.msra.mxu0 0.0
  %350 = vmatprep.subr.mxu0 0.0
  %351 = vmatpush2.msra.mxu0 0.0
  %352 = vmatprep.subr.mxu0 0.0
  %353 = vmatpush2.msra.mxu0 0.0
  %354 = vmatprep.subr.mxu0 0.0
  %355 = vmatpush2.msra.mxu0 0.0
  %356 = vmatprep.subr.mxu0 0.0
  %357 = vmatpush2.msra.mxu0 0.0
  %358 = vmatprep.subr.mxu0 0.0
  %359 = vmatpush2.msra.mxu0 0.0
  %360 = vmatprep.subr.mxu0 0.0
  %361 = vmatpush2.msra.mxu0 0.0
  %362 = vmatprep.subr.mxu0 0.0
  %363 = vmatpush2.msra.mxu0 0.0
  %364 = vmatprep.subr.mxu0 0.0
  %365 = vmatpush2.msra.mxu0 0.0
  %366 = vmatprep.subr.mxu0 0.0
  %367 = vmatpush2.msra.mxu0 0.0
  %368 = vmatprep.subr.mxu0 0.0
  %369 = vmatpush2.msra.mxu0 0.0
  %370 = vmatprep.mubr.f32.mxu0 0.0
  %371 = vmatmul.mubr.f32.gmra.mxu0 %v283
  %v372 = vpop.f32.mrf.mxu0
  %v373 = vadd.f32 %v244, %v372
  %v374 = vpop.f32.mrf.mxu0
  %375 = vmatprep.mubr.f32.mxu0 0.0
  %376 = vmatmul.mubr.f32.gmra.mxu0 %v286
  %v377 = vpop.f32.mrf.mxu0
  %v378 = vadd.f32 %v249, %v377
  %v379 = vpop.f32.mrf.mxu0
  %380 = vmatprep.mubr.f32.mxu0 0.0
  %381 = vmatmul.mubr.f32.gmra.mxu0 %v289
  %v382 = vpop.f32.mrf.mxu0
  %v383 = vadd.f32 %v254, %v382
  %v384 = vpop.f32.mrf.mxu0
  %385 = vmatprep.mubr.f32.mxu0 0.0
  %386 = vmatmul.mubr.f32.gmra.mxu0 %v292
  %v387 = vpop.f32.mrf.mxu0
  %v388 = vadd.f32 %v259, %v387
  %v389 = vpop.f32.mrf.mxu0
  %390 = vmatprep.mubr.f32.mxu0 0.0
  %391 = vmatmul.mubr.f32.gmra.mxu0 %v295
  %v392 = vpop.f32.mrf.mxu0
  %v393 = vadd.f32 %v264, %v392
  %v394 = vpop.f32.mrf.mxu0
  %395 = vmatprep.mubr.f32.mxu0 0.0
  %396 = vmatmul.mubr.f32.gmra.mxu0 %v298
  %v397 = vpop.f32.mrf.mxu0
  %v398 = vadd.f32 %v269, %v397
  %v399 = vpop.f32.mrf.mxu0
  %400 = vmatprep.mubr.f32.mxu0 0.0
  %401 = vmatmul.mubr.f32.gmra.mxu0 %v301
  %v402 = vpop.f32.mrf.mxu0
  %v403 = vadd.f32 %v274, %v402
  %v404 = vpop.f32.mrf.mxu0
  %405 = vmatprep.mubr.f32.mxu0 0.0
  %406 = vmatmul.mubr.f32.gmra.mxu0 %v304
  %v407 = vpop.f32.mrf.mxu0
  %v408 = vadd.f32 %v279, %v407
  %v409 = vpop.f32.mrf.mxu0
  %410 = vdwg.mxu0
  %v411 = vmax.f32 %v373, 0.0
  %v412 = vmax.f32 %v378, 0.0
  %v413 = vmax.f32 %v383, 0.0
  %v414 = vmax.f32 %v388, 0.0
  %v415 = vmax.f32 %v393, 0.0
  %v416 = vmax.f32 %v398, 0.0
  %v417 = vmax.f32 %v403, 0.0
  %v418 = vmax.f32 %v408, 0.0
  %v419 = vld [vmem:[%s5] sm:$0xff]
  %v420 = vld [vmem:[%s6] sm:$0xff]
  %422 = vset.pattern.permute.xlu0 0
  %423 = vperm.xlu0 %422, %v420
  %v424 = vpop.permute.xlu0 %423
  %v427 = vsel %vm281, %v419, 0
  %429 = vmatprep.subr.mxu0 0.0
  %430 = vmatpush1.msra.mxu0 0.0
  %431 = vmatprep.subr.mxu0 0.0
  %432 = vmatpush1.msra.mxu0 0.0
  %433 = vmatprep.subr.mxu0 0.0
  %434 = vmatpush1.msra.mxu0 0.0
  %435 = vmatprep.subr.mxu0 0.0
  %436 = vmatpush1.msra.mxu0 0.0
  %437 = vmatprep.subr.mxu0 0.0
  %438 = vmatpush1.msra.mxu0 0.0
  %439 = vmatprep.subr.mxu0 0.0
  %440 = vmatpush1.msra.mxu0 0.0
  %441 = vmatprep.subr.mxu0 0.0
  %442 = vmatpush1.msra.mxu0 0.0
  %443 = vmatprep.subr.mxu0 0.0
  %444 = vmatpush1.msra.mxu0 0.0
  %445 = vmatprep.subr.mxu0 0.0
  %446 = vmatpush1.msra.mxu0 %v418
  %447 = vmatprep.subr.mxu0 0.0
  %448 = vmatpush1.msra.mxu0 %v417
  %449 = vmatprep.subr.mxu0 0.0
  %450 = vmatpush1.msra.mxu0 %v416
  %451 = vmatprep.subr.mxu0 0.0
  %452 = vmatpush1.msra.mxu0 %v415
  %453 = vmatprep.subr.mxu0 0.0
  %454 = vmatpush1.msra.mxu0 %v414
  %455 = vmatprep.subr.mxu0 0.0
  %456 = vmatpush1.msra.mxu0 %v413
  %457 = vmatprep.subr.mxu0 0.0
  %458 = vmatpush1.msra.mxu0 %v412
  %459 = vmatprep.subr.mxu0 0.0
  %460 = vmatpush1.msra.mxu0 %v411
  %461 = vmatprep.subr.mxu0 0.0
  %462 = vmatpush2.msra.mxu0 0.0
  %463 = vmatprep.subr.mxu0 0.0
  %464 = vmatpush2.msra.mxu0 0.0
  %465 = vmatprep.subr.mxu0 0.0
  %466 = vmatpush2.msra.mxu0 0.0
  %467 = vmatprep.subr.mxu0 0.0
  %468 = vmatpush2.msra.mxu0 0.0
  %469 = vmatprep.subr.mxu0 0.0
  %470 = vmatpush2.msra.mxu0 0.0
  %471 = vmatprep.subr.mxu0 0.0
  %472 = vmatpush2.msra.mxu0 0.0
  %473 = vmatprep.subr.mxu0 0.0
  %474 = vmatpush2.msra.mxu0 0.0
  %475 = vmatprep.subr.mxu0 0.0
  %476 = vmatpush2.msra.mxu0 0.0
  %477 = vmatprep.subr.mxu0 0.0
  %478 = vmatpush2.msra.mxu0 0.0
  %479 = vmatprep.subr.mxu0 0.0
  %480 = vmatpush2.msra.mxu0 0.0
  %481 = vmatprep.subr.mxu0 0.0
  %482 = vmatpush2.msra.mxu0 0.0
  %483 = vmatprep.subr.mxu0 0.0
  %484 = vmatpush2.msra.mxu0 0.0
  %485 = vmatprep.subr.mxu0 0.0
  %486 = vmatpush2.msra.mxu0 0.0
  %487 = vmatprep.subr.mxu0 0.0
  %488 = vmatpush2.msra.mxu0 0.0
  %489 = vmatprep.subr.mxu0 0.0
  %490 = vmatpush2.msra.mxu0 0.0
  %491 = vmatprep.subr.mxu0 0.0
  %492 = vmatpush2.msra.mxu0 0.0
  %493 = vmatprep.mubr.f32.mxu0 0.0
  %494 = vmatmul.mubr.f32.gmra.mxu0 %v427
  %v495 = vpop.f32.mrf.mxu0
  %v496 = vadd.f32 %v424, %v495
  %v497 = vpop.f32.mrf.mxu0
  %498 = vdwg.mxu0
  %499 = vst [vmem:[%s7] sm:$0xff] %v496
  // Predicated region
  $region30: #{two_moons_forward.1} parent=0 // pred_check
    _
  $region31: #{two_moons_forward.1} parent=0 // pred_check_branch
    %501 = sbr.rel (0) target = $region33
  $region32: #{two_moons_forward.1} parent=0 // pred_region
    _
  $region33: #{two_moons_forward.1} parent=0 // pred_fallthru
    _
  // Predicated region
  $region34: #{two_moons_forward.1} parent=0 // pred_check
    _
  $region35: #{two_moons_forward.1} parent=0 // pred_check_branch
    %503 = sbr.rel (0) target = $region37
  $region36: #{two_moons_forward.1} parent=0 // pred_region
    _
  $region37: #{two_moons_forward.1} parent=0 // pred_fallthru
    _

</llo_original>
